<compile_context>
chip_gen: v5e
topology: v5e:2x2
jax: 0.10.0
libtpu: 0.0.40
codegen_flags: <defaults>
</compile_context>

<pallas_src>
import jax
import jax.numpy as jnp
from jax import lax
from jax.experimental import pallas as pl
from jax.experimental.pallas import tpu as pltpu


def _round_up(x: int, m: int) -> int:
    return ((x + m - 1) // m) * m


def pos_embed_kernel(idx_ref, table_ref, out_ref):
    # idx_ref:   (2, f, TM_v) int32, lane-dense.  Row 0 = h index,
    #            row 1 = Hd + w index (offset applied in the wrapper).
    # table_ref: (K, D) = concat([pos_embed_height, pos_embed_width], axis=0).
    # out_ref:   (TM_v, f*D).  View-row r, lane-group j holds the embedding of
    #            flattened row r*f + j.
    K, D = table_ref.shape
    _, f, tm_v = idx_ref.shape

    table = table_ref[...]                        # (K, D), resident across grid
    idx = idx_ref[...]                            # (2, f, TM_v)
    k_iota = lax.broadcasted_iota(jnp.int32, (K, tm_v), 0)

    for j in range(f):                            # small static unroll (f <= 16)
        h = idx[0:1, j, :]                        # (1, TM_v)
        w = idx[1:2, j, :]                        # (1, TM_v)
        # Two-hot built directly in (K, TM_v) orientation -> no transpose.
        # h and w+Hd live in disjoint row ranges, so exactly two ones per col.
        two_hot = ((k_iota == h) | (k_iota == w)).astype(table.dtype)
        # Contract over K (dim 0 of both): (K, TM_v) x (K, D) -> (TM_v, D).
        chunk = lax.dot_general(
            two_hot, table,
            dimension_numbers=(((0,), (0,)), ((), ())),
            preferred_element_type=jnp.float32,
        )
        out_ref[:, j * D:(j + 1) * D] = chunk.astype(out_ref.dtype)


def positional_embedding(patch_positions, pos_embed_height, pos_embed_width,
                         *, target_rows_per_tile: int = 1024):
    B, N, two = patch_positions.shape
    assert two == 2
    Hd, D = pos_embed_height.shape
    Wd, D2 = pos_embed_width.shape
    assert D2 == D
    K = Hd + Wd
    R = B * N
    out_dtype = pos_embed_height.dtype
    itemsize = jnp.dtype(out_dtype).itemsize

    # Fused table -> single two-hot matmul per tile (no separate add).
    table = jnp.concatenate(
        [pos_embed_height, pos_embed_width.astype(out_dtype)], axis=0)   # (K, D)

    # Lane fold factor: make the output block lane-dense when D < 128.
    f = 128 // D if (D < 128 and 128 % D == 0) else 1

    # Flatten (B, N) -> rows; lane-dense int32 indices; offset w by Hd.
    h_idx = patch_positions[..., 0].reshape(R).astype(jnp.int32)
    w_idx = patch_positions[..., 1].reshape(R).astype(jnp.int32) + Hd
    idx = jnp.stack([h_idx, w_idx], axis=0)                              # (2, R)

    # Row tiling over the folded view.
    R_v = -(-R // f)                               # ceil(R / f)
    tile_rows_v = max(8, target_rows_per_tile // f)
    if R_v <= tile_rows_v:
        TM_v = _round_up(R_v, 8)                   # single tile: block == full dims
    else:
        TM_v = _round_up(tile_rows_v, 128)         # multi-tile: lane/sublane aligned
    R_v_pad = _round_up(R_v, TM_v)
    R_pad = R_v_pad * f

    # Pad rows with index 0 (a valid table row; padded rows are sliced off).
    idx = jnp.pad(idx, ((0, 0), (0, R_pad - R)))
    # idx_v[:, j, r] = idx[:, r*f + j]   (matches the folded output layout)
    idx_v = idx.reshape(2, R_v_pad, f).transpose(0, 2, 1)                # (2, f, R_v_pad)

    grid = (R_v_pad // TM_v,)

    cost = pl.CostEstimate(
        flops=2 * R_pad * K * D,
        transcendentals=0,
        bytes_accessed=R_pad * D * itemsize + 2 * R_pad * 4 + K * D * itemsize,
    )

    # Double-buffered index + output tiles plus the resident table, with slack.
    vmem_need = (2 * 2 * f * TM_v * 4
                 + 2 * TM_v * f * D * itemsize
                 + 2 * K * D * itemsize)
    vmem_limit = int(min(max(2 * vmem_need, 32 * 1024 * 1024), 64 * 1024 * 1024))

    out_view = pl.pallas_call(
        pos_embed_kernel,
        out_shape=jax.ShapeDtypeStruct((R_v_pad, f * D), out_dtype),
        grid_spec=pltpu.PrefetchScalarGridSpec(
            num_scalar_prefetch=0,
            grid=grid,
            in_specs=[
                pl.BlockSpec((2, f, TM_v), lambda i: (0, 0, i)),   # lane-dense idx
                pl.BlockSpec((K, D), lambda i: (0, 0)),            # resident table
            ],
            out_specs=pl.BlockSpec((TM_v, f * D), lambda i: (i, 0)),
        ),
        compiler_params=pltpu.CompilerParams(
            dimension_semantics=("parallel",),     # row tiles shard across TCs
            vmem_limit_bytes=vmem_limit,
        ),
        cost_estimate=cost,
    )(idx_v, table)

    # Undo the lane fold (free row-major reshape) and drop row padding.
    return out_view.reshape(R_pad, D)[:R].reshape(B, N, D)


def _reference(patch_positions, pos_embed_height, pos_embed_width):
    h_idx = patch_positions[..., 0]
    w_idx = patch_positions[..., 1]
    return pos_embed_height[h_idx] + pos_embed_width[w_idx]


if __name__ == "__main__":
    key = jax.random.PRNGKey(0)

    # ---- Test 1: small shapes consistent with the module ----------------
    k_h, k_w, k_hi, k_wi = jax.random.split(key, 4)
    B, N = 2, 8
    patch_height_dim, patch_width_dim, dim = 8, 8, 32

    pos_embed_height = jax.random.normal(k_h, (patch_height_dim, dim), jnp.float32)
    pos_embed_width = jax.random.normal(k_w, (patch_width_dim, dim), jnp.float32)

    h_indices = jax.random.randint(k_hi, (B, N), 0, patch_height_dim, jnp.int32)
    w_indices = jax.random.randint(k_wi, (B, N), 0, patch_width_dim, jnp.int32)
    patch_positions = jnp.stack([h_indices, w_indices], axis=-1)  # (B, N, 2)

    out = positional_embedding(patch_positions, pos_embed_height, pos_embed_width)
    out = jax.block_until_ready(out)

    ref = _reference(patch_positions, pos_embed_height, pos_embed_width)
    assert out.shape == (B, N, dim)
    assert jnp.allclose(out, ref, atol=1e-5, rtol=1e-5), "mismatch vs reference (small)"

    # ---- Test 2: exercises the multi-tile / padded path ------------------
    k_h2, k_w2, k_hi2, k_wi2 = jax.random.split(jax.random.PRNGKey(1), 4)
    B2, N2 = 4, 300
    Hd2, Wd2, D2 = 16, 24, 64

    peh2 = jax.random.normal(k_h2, (Hd2, D2), jnp.float32)
    pew2 = jax.random.normal(k_w2, (Wd2, D2), jnp.float32)
    hi2 = jax.random.randint(k_hi2, (B2, N2), 0, Hd2, jnp.int32)
    wi2 = jax.random.randint(k_wi2, (B2, N2), 0, Wd2, jnp.int32)
    pp2 = jnp.stack([hi2, wi2], axis=-1)

    out2 = positional_embedding(pp2, peh2, pew2, target_rows_per_tile=1024)
    out2 = jax.block_until_ready(out2)
    ref2 = _reference(pp2, peh2, pew2)
    assert out2.shape == (B2, N2, D2)
    assert jnp.allclose(out2, ref2, atol=1e-5, rtol=1e-5), "mismatch vs reference (large)"

    print("KERNEL_OK")
</pallas_src>

<mosaic_0001>
module attributes {stable_mosaic.version = 11 : i64} {
  func.func @pos_embed_kernel(%arg0: i32, %arg1: memref<2x4x8xi32, #tpu.memory_space<vmem>>, %arg2: memref<16x32xf32, #tpu.memory_space<vmem>>, %arg3: memref<8x128xf32, #tpu.memory_space<vmem>>) attributes {dimension_semantics = [#tpu.dimension_semantics<parallel>], iteration_bounds = array<i64: 1>, scalar_prefetch = 0 : i64, scratch_operands = 0 : i64, tpu.core_type = #tpu.core_type<tc>, window_params = [{transform_indices = @transform_0, window_bounds = array<i64: 2, 4, 8>}, {pipeline_mode = #tpu.pipeline_mode<synchronous>, transform_indices = @transform_1, window_bounds = array<i64: 16, 32>}, {transform_indices = @transform_2, window_bounds = array<i64: 8, 128>}]} {
    %c0 = arith.constant 0 : index
    %c0_0 = arith.constant 0 : index
    %0 = vector.load %arg2[%c0, %c0_0] : memref<16x32xf32, #tpu.memory_space<vmem>>, vector<16x32xf32>
    %c0_1 = arith.constant 0 : index
    %c0_2 = arith.constant 0 : index
    %c0_3 = arith.constant 0 : index
    %1 = vector.load %arg1[%c0_1, %c0_2, %c0_3] : memref<2x4x8xi32, #tpu.memory_space<vmem>>, vector<2x4x8xi32>
    %2 = tpu.iota {dimensions = array<i32: 0>} : vector<16x8xi32>
    %3 = vector.extract_strided_slice %1 {offsets = [0, 0, 0], sizes = [1, 1, 8], strides = [1, 1, 1]} : vector<2x4x8xi32> to vector<1x1x8xi32>
    %4 = vector.shape_cast %3 : vector<1x1x8xi32> to vector<1x8xi32>
    %5 = vector.extract_strided_slice %1 {offsets = [1, 0, 0], sizes = [1, 1, 8], strides = [1, 1, 1]} : vector<2x4x8xi32> to vector<1x1x8xi32>
    %6 = vector.shape_cast %5 : vector<1x1x8xi32> to vector<1x8xi32>
    %7 = vector.broadcast %4 : vector<1x8xi32> to vector<16x8xi32>
    %8 = arith.cmpi eq, %2, %7 : vector<16x8xi32>
    %9 = vector.broadcast %6 : vector<1x8xi32> to vector<16x8xi32>
    %10 = arith.cmpi eq, %2, %9 : vector<16x8xi32>
    %11 = arith.ori %8, %10 : vector<16x8xi1>
    %12 = arith.extui %11 : vector<16x8xi1> to vector<16x8xi32>
    %13 = arith.sitofp %12 : vector<16x8xi32> to vector<16x8xf32>
    %cst = arith.constant dense<0.000000e+00> : vector<8x32xf32>
    %14 = tpu.matmul %13, %0, %cst {dimension_numbers = #tpu.dot_dimension_numbers<[0], [0], [1], [1], [0, 1, 1, 1], [], []>} : vector<16x8xf32>, vector<16x32xf32>, vector<8x32xf32> -> vector<8x32xf32>
    %c0_4 = arith.constant 0 : index
    %c0_5 = arith.constant 0 : index
    %15 = vector.load %arg3[%c0_4, %c0_5] : memref<8x128xf32, #tpu.memory_space<vmem>>, vector<8x32xf32>
    tpu.vector_store %arg3[%c0_4, %c0_5], %14 {strides = array<i32>} : memref<8x128xf32, #tpu.memory_space<vmem>>, vector<8x32xf32>,
    %16 = vector.extract_strided_slice %1 {offsets = [0, 1, 0], sizes = [1, 1, 8], strides = [1, 1, 1]} : vector<2x4x8xi32> to vector<1x1x8xi32>
    %17 = vector.shape_cast %16 : vector<1x1x8xi32> to vector<1x8xi32>
    %18 = vector.extract_strided_slice %1 {offsets = [1, 1, 0], sizes = [1, 1, 8], strides = [1, 1, 1]} : vector<2x4x8xi32> to vector<1x1x8xi32>
    %19 = vector.shape_cast %18 : vector<1x1x8xi32> to vector<1x8xi32>
    %20 = vector.broadcast %17 : vector<1x8xi32> to vector<16x8xi32>
    %21 = arith.cmpi eq, %2, %20 : vector<16x8xi32>
    %22 = vector.broadcast %19 : vector<1x8xi32> to vector<16x8xi32>
    %23 = arith.cmpi eq, %2, %22 : vector<16x8xi32>
    %24 = arith.ori %21, %23 : vector<16x8xi1>
    %25 = arith.extui %24 : vector<16x8xi1> to vector<16x8xi32>
    %26 = arith.sitofp %25 : vector<16x8xi32> to vector<16x8xf32>
    %cst_6 = arith.constant dense<0.000000e+00> : vector<8x32xf32>
    %27 = tpu.matmul %26, %0, %cst_6 {dimension_numbers = #tpu.dot_dimension_numbers<[0], [0], [1], [1], [0, 1, 1, 1], [], []>} : vector<16x8xf32>, vector<16x32xf32>, vector<8x32xf32> -> vector<8x32xf32>
    %c0_7 = arith.constant 0 : index
    %c32 = arith.constant 32 : index
    %28 = vector.load %arg3[%c0_7, %c32] : memref<8x128xf32, #tpu.memory_space<vmem>>, vector<8x32xf32>
    tpu.vector_store %arg3[%c0_7, %c32], %27 {strides = array<i32>} : memref<8x128xf32, #tpu.memory_space<vmem>>, vector<8x32xf32>,
    %29 = vector.extract_strided_slice %1 {offsets = [0, 2, 0], sizes = [1, 1, 8], strides = [1, 1, 1]} : vector<2x4x8xi32> to vector<1x1x8xi32>
    %30 = vector.shape_cast %29 : vector<1x1x8xi32> to vector<1x8xi32>
    %31 = vector.extract_strided_slice %1 {offsets = [1, 2, 0], sizes = [1, 1, 8], strides = [1, 1, 1]} : vector<2x4x8xi32> to vector<1x1x8xi32>
    %32 = vector.shape_cast %31 : vector<1x1x8xi32> to vector<1x8xi32>
    %33 = vector.broadcast %30 : vector<1x8xi32> to vector<16x8xi32>
    %34 = arith.cmpi eq, %2, %33 : vector<16x8xi32>
    %35 = vector.broadcast %32 : vector<1x8xi32> to vector<16x8xi32>
    %36 = arith.cmpi eq, %2, %35 : vector<16x8xi32>
    %37 = arith.ori %34, %36 : vector<16x8xi1>
    %38 = arith.extui %37 : vector<16x8xi1> to vector<16x8xi32>
    %39 = arith.sitofp %38 : vector<16x8xi32> to vector<16x8xf32>
    %cst_8 = arith.constant dense<0.000000e+00> : vector<8x32xf32>
    %40 = tpu.matmul %39, %0, %cst_8 {dimension_numbers = #tpu.dot_dimension_numbers<[0], [0], [1], [1], [0, 1, 1, 1], [], []>} : vector<16x8xf32>, vector<16x32xf32>, vector<8x32xf32> -> vector<8x32xf32>
    %c0_9 = arith.constant 0 : index
    %c64 = arith.constant 64 : index
    %41 = vector.load %arg3[%c0_9, %c64] : memref<8x128xf32, #tpu.memory_space<vmem>>, vector<8x32xf32>
    tpu.vector_store %arg3[%c0_9, %c64], %40 {strides = array<i32>} : memref<8x128xf32, #tpu.memory_space<vmem>>, vector<8x32xf32>,
    %42 = vector.extract_strided_slice %1 {offsets = [0, 3, 0], sizes = [1, 1, 8], strides = [1, 1, 1]} : vector<2x4x8xi32> to vector<1x1x8xi32>
    %43 = vector.shape_cast %42 : vector<1x1x8xi32> to vector<1x8xi32>
    %44 = vector.extract_strided_slice %1 {offsets = [1, 3, 0], sizes = [1, 1, 8], strides = [1, 1, 1]} : vector<2x4x8xi32> to vector<1x1x8xi32>
    %45 = vector.shape_cast %44 : vector<1x1x8xi32> to vector<1x8xi32>
    %46 = vector.broadcast %43 : vector<1x8xi32> to vector<16x8xi32>
    %47 = arith.cmpi eq, %2, %46 : vector<16x8xi32>
    %48 = vector.broadcast %45 : vector<1x8xi32> to vector<16x8xi32>
    %49 = arith.cmpi eq, %2, %48 : vector<16x8xi32>
    %50 = arith.ori %47, %49 : vector<16x8xi1>
    %51 = arith.extui %50 : vector<16x8xi1> to vector<16x8xi32>
    %52 = arith.sitofp %51 : vector<16x8xi32> to vector<16x8xf32>
    %cst_10 = arith.constant dense<0.000000e+00> : vector<8x32xf32>
    %53 = tpu.matmul %52, %0, %cst_10 {dimension_numbers = #tpu.dot_dimension_numbers<[0], [0], [1], [1], [0, 1, 1, 1], [], []>} : vector<16x8xf32>, vector<16x32xf32>, vector<8x32xf32> -> vector<8x32xf32>
    %c0_11 = arith.constant 0 : index
    %c96 = arith.constant 96 : index
    %54 = vector.load %arg3[%c0_11, %c96] : memref<8x128xf32, #tpu.memory_space<vmem>>, vector<8x32xf32>
    tpu.vector_store %arg3[%c0_11, %c96], %53 {strides = array<i32>} : memref<8x128xf32, #tpu.memory_space<vmem>>, vector<8x32xf32>,
    return
  }
  func.func @transform_0(%arg0: i32) -> (i32, i32, i32) {
    %c0_i32 = arith.constant 0 : i32
    %c0_i32_0 = arith.constant 0 : i32
    %c0_i32_1 = arith.constant 0 : i32
    return %c0_i32, %c0_i32_0, %arg0 : i32, i32, i32
  }
  func.func @transform_1(%arg0: i32) -> (i32, i32) {
    %c0_i32 = arith.constant 0 : i32
    %c0_i32_0 = arith.constant 0 : i32
    %c0_i32_1 = arith.constant 0 : i32
    return %c0_i32, %c0_i32_0 : i32, i32
  }
  func.func @transform_2(%arg0: i32) -> (i32, i32) {
    %c0_i32 = arith.constant 0 : i32
    %c0_i32_0 = arith.constant 0 : i32
    return %arg0, %c0_i32 : i32, i32
  }
}

</mosaic_0001>

<llo_original>
// kernel: tpu_custom_call.1
$region0: #{tpu_custom_call.1}
  #allocation0 [shape = 'u32[]', space=smem, size = 0x4, offset = 0x4, fixed_abs, tag = 'smem constant byte address 0x4 - core index']
  #allocation1 [shape = 'u32[72,128]{1,0:T(1,128)}', space=vmem, size = 0x9000, scoped, tag = 'internal scratch']
  %s0 = inlined_call_operand.hbm [shape: s32[2,4,8], index: 0, kind: input, shape index: {}]
  %s1 = inlined_call_operand.hbm [shape: f32[16,32], index: 1, kind: input, shape index: {}]
  %s2 = inlined_call_operand.hbm [shape: f32[8,128], index: 2, kind: output, shape index: {}]
  %s3 = sld [smem:[#allocation0]]
  $region26: #{tpu_custom_call.1} parent=0
    _
  %s5 = ssub.s32 1, %s3
  %s6 = scalar_select 0, %s5, %s3
  $region1: #{tpu_custom_call.1} parent=0
    #allocation2 [shape = 'u8[4096]{0}', space=vmem, size = 0x1000, scoped, tag = 'input window, operand 0, single buffered']
    #allocation3 [shape = 's32[1]{0}', space=sflag, size = 0x4, scoped, tag = 'scoped memory for tpu_custom_call.1']
    #allocation4 [shape = 's32[1]{0}', space=sflag, size = 0x4, scoped, tag = 'scoped memory for tpu_custom_call.1']
    #allocation5 [shape = 'u8[8192]{0}', space=vmem, size = 0x2000, scoped, tag = 'input window, operand 1, single buffered']
    #allocation6 [shape = 's32[1]{0}', space=sflag, size = 0x4, scoped, tag = 'scoped memory for tpu_custom_call.1']
    #allocation7 [shape = 'u8[4096]{0}', space=vmem, size = 0x1000, scoped, tag = 'output window, operand 0, single buffered']
    %7 = vsyncpa [#allocation3], 0
    %8 = vsyncpa [#allocation6], 0
    %9 = vsyncpa [#allocation4], 0
    // Predicated region
    $region2: #{tpu_custom_call.1} parent=1 // pred_check
      _
    $region3: #{tpu_custom_call.1} parent=1 // pred_check_branch
      %11 = sbr.rel (0) target = $region5
    $region4: #{tpu_custom_call.1} parent=1 // pred_region
      %13 = vsyncadd [#allocation3], 0
      %s14 = sshll.u32 %s0, 4
      %s15 = int_to_ptr.hbm [resolvable:$true] %s14
      %s16 = sshll.u32 [#allocation2], 4
      %s17 = int_to_ptr.vmem [resolvable:$true] %s16
      %22 = dma.hbm_to_vmem [thread:$0]  %s15, 128, %s17, [#allocation3], 64, 64, 4
    $region5: #{tpu_custom_call.1} parent=1 // pred_fallthru
      _
    // Predicated region
    $region6: #{tpu_custom_call.1} parent=1 // pred_check
      _
    $region7: #{tpu_custom_call.1} parent=1 // pred_check_branch
      %24 = sbr.rel (0) target = $region9
    $region8: #{tpu_custom_call.1} parent=1 // pred_region
      %26 = vsyncadd [#allocation6], 0
      %s27 = sshll.u32 %s1, 4
      %s28 = int_to_ptr.hbm [resolvable:$true] %s27
      %s29 = sshll.u32 [#allocation5], 4
      %s30 = int_to_ptr.vmem [resolvable:$true] %s29
      %35 = dma.hbm_to_vmem [thread:$0]  %s28, 256, %s30, [#allocation6], 128, 128, 8
    $region9: #{tpu_custom_call.1} parent=1 // pred_fallthru
      _
    // Predicated region
    $region10: #{tpu_custom_call.1} parent=1 // pred_check
      _
    $region11: #{tpu_custom_call.1} parent=1 // pred_check_branch
      %37 = sbr.rel (0) target = $region13
    $region12: #{tpu_custom_call.1} parent=1 // pred_region
      %39 = dma.done [#allocation3], 128
    $region13: #{tpu_custom_call.1} parent=1 // pred_fallthru
      _
    // Predicated region
    $region14: #{tpu_custom_call.1} parent=1 // pred_check
      _
    $region15: #{tpu_custom_call.1} parent=1 // pred_check_branch
      %41 = sbr.rel (0) target = $region17
    $region16: #{tpu_custom_call.1} parent=1 // pred_region
      %43 = dma.done [#allocation6], 256
    $region17: #{tpu_custom_call.1} parent=1 // pred_fallthru
      _
    %v44 = vld [vmem:[#allocation5] sm:$0xff]
    %v45 = vld [vmem:[#allocation5 + $0x8] sm:$0xff]
    %v46 = vld [vmem:[#allocation2] sm:$0xf]
    %v47 = vld [vmem:[#allocation2 + $0x4] sm:$0xf]
    %v48 = vlaneseq
    %v49 = vshrl.u32 %v48, 7
    %v50 = vadd.s32 %v49, 8
    %v51 = vperm.slane %v46, 0
    %vm52 = vcmp.eq.s32.totalorder %v49, %v51
    %vm53 = vcmp.eq.s32.totalorder %v50, %v51
    %v54 = vperm.slane %v47, 0
    %vm55 = vcmp.eq.s32.totalorder %v49, %v54
    %vm56 = vcmp.eq.s32.totalorder %v50, %v54
    %vm57 = vmor %vm52, %vm55
    %vm58 = vmor %vm53, %vm56
    %v59 = vsel %vm57, 1, 0
    %v60 = vsel %vm58, 1, 0
    %v61 = vcvt.s32.f32 %v59
    %v62 = vcvt.s32.f32 %v60
    %63 = vxpose.xlu0.b32.start [1/16] %v61, 128
    %64 = vxpose.xlu0.b32.cont [2/16] %v62, 128
    %65 = vxpose.xlu0.b32.cont [3/16] 0.0, 128
    %66 = vxpose.xlu0.b32.cont [4/16] 0.0, 128
    %67 = vxpose.xlu0.b32.cont [5/16] 0.0, 128
    %68 = vxpose.xlu0.b32.cont [6/16] 0.0, 128
    %69 = vxpose.xlu0.b32.cont [7/16] 0.0, 128
    %70 = vxpose.xlu0.b32.cont [8/16] 0.0, 128
    %71 = vxpose.xlu0.b32.cont [9/16] 0.0, 128
    %72 = vxpose.xlu0.b32.cont [10/16] 0.0, 128
    %73 = vxpose.xlu0.b32.cont [11/16] 0.0, 128
    %74 = vxpose.xlu0.b32.cont [12/16] 0.0, 128
    %75 = vxpose.xlu0.b32.cont [13/16] 0.0, 128
    %76 = vxpose.xlu0.b32.cont [14/16] 0.0, 128
    %77 = vxpose.xlu0.b32.cont [15/16] 0.0, 128
    %78 = vxpose.xlu0.b32.end [16/16] 0.0, 128
    %v79 = vpop.trf.xlu0
    %v80 = vpop.trf.xlu0
    %v81 = vpop.trf.xlu0
    %v82 = vpop.trf.xlu0
    %v83 = vpop.trf.xlu0
    %v84 = vpop.trf.xlu0
    %v85 = vpop.trf.xlu0
    %v86 = vpop.trf.xlu0
    %v87 = vpop.trf.xlu0
    %v88 = vpop.trf.xlu0
    %v89 = vpop.trf.xlu0
    %v90 = vpop.trf.xlu0
    %v91 = vpop.trf.xlu0
    %v92 = vpop.trf.xlu0
    %v93 = vpop.trf.xlu0
    %v94 = vpop.trf.xlu0
    %vm95 = vcmask 130048
    %v97 = vsel %vm95, %v79, 0
    %99 = vmatpush.msra.mxu0 0.0
    %100 = vmatpush.msra.mxu0 0.0
    %101 = vmatpush.msra.mxu0 0.0
    %102 = vmatpush.msra.mxu0 0.0
    %103 = vmatpush.msra.mxu0 0.0
    %104 = vmatpush.msra.mxu0 0.0
    %105 = vmatpush.msra.mxu0 0.0
    %106 = vmatpush.msra.mxu0 0.0
    %107 = vmatpush.msra.mxu0 0.0
    %108 = vmatpush.msra.mxu0 0.0
    %109 = vmatpush.msra.mxu0 0.0
    %110 = vmatpush.msra.mxu0 0.0
    %111 = vmatpush.msra.mxu0 0.0
    %112 = vmatpush.msra.mxu0 0.0
    %113 = vmatpush.msra.mxu0 %v45
    %114 = vmatpush.msra.mxu0 %v44
    %115 = vmatmul.f32.gmra.mxu0 %v97
    %v116 = vpop.f32.mrf.mxu0
    %v117 = vadd.f32 0.0, %v116
    %118 = vdwg.mxu0
    %vm119 = vcmask 261120
    %120 = vst.msk [vmem:[#allocation7] sm:$0xff] %vm119, %v117
    %v121 = vperm.slane %v46, 1
    %vm122 = vcmp.eq.s32.totalorder %v49, %v121
    %vm123 = vcmp.eq.s32.totalorder %v50, %v121
    %v124 = vperm.slane %v47, 1
    %vm125 = vcmp.eq.s32.totalorder %v49, %v124
    %vm126 = vcmp.eq.s32.totalorder %v50, %v124
    %vm127 = vmor %vm122, %vm125
    %vm128 = vmor %vm123, %vm126
    %v129 = vsel %vm127, 1, 0
    %v130 = vsel %vm128, 1, 0
    %v131 = vcvt.s32.f32 %v129
    %v132 = vcvt.s32.f32 %v130
    %133 = vxpose.xlu0.b32.start [1/16] %v131, 128
    %134 = vxpose.xlu0.b32.cont [2/16] %v132, 128
    %135 = vxpose.xlu0.b32.cont [3/16] 0.0, 128
    %136 = vxpose.xlu0.b32.cont [4/16] 0.0, 128
    %137 = vxpose.xlu0.b32.cont [5/16] 0.0, 128
    %138 = vxpose.xlu0.b32.cont [6/16] 0.0, 128
    %139 = vxpose.xlu0.b32.cont [7/16] 0.0, 128
    %140 = vxpose.xlu0.b32.cont [8/16] 0.0, 128
    %141 = vxpose.xlu0.b32.cont [9/16] 0.0, 128
    %142 = vxpose.xlu0.b32.cont [10/16] 0.0, 128
    %143 = vxpose.xlu0.b32.cont [11/16] 0.0, 128
    %144 = vxpose.xlu0.b32.cont [12/16] 0.0, 128
    %145 = vxpose.xlu0.b32.cont [13/16] 0.0, 128
    %146 = vxpose.xlu0.b32.cont [14/16] 0.0, 128
    %147 = vxpose.xlu0.b32.cont [15/16] 0.0, 128
    %148 = vxpose.xlu0.b32.end [16/16] 0.0, 128
    %v149 = vpop.trf.xlu0
    %v150 = vpop.trf.xlu0
    %v151 = vpop.trf.xlu0
    %v152 = vpop.trf.xlu0
    %v153 = vpop.trf.xlu0
    %v154 = vpop.trf.xlu0
    %v155 = vpop.trf.xlu0
    %v156 = vpop.trf.xlu0
    %v157 = vpop.trf.xlu0
    %v158 = vpop.trf.xlu0
    %v159 = vpop.trf.xlu0
    %v160 = vpop.trf.xlu0
    %v161 = vpop.trf.xlu0
    %v162 = vpop.trf.xlu0
    %v163 = vpop.trf.xlu0
    %v164 = vpop.trf.xlu0
    %v166 = vsel %vm95, %v149, 0
    %168 = vmatpush.msra.mxu0 0.0
    %169 = vmatpush.msra.mxu0 0.0
    %170 = vmatpush.msra.mxu0 0.0
    %171 = vmatpush.msra.mxu0 0.0
    %172 = vmatpush.msra.mxu0 0.0
    %173 = vmatpush.msra.mxu0 0.0
    %174 = vmatpush.msra.mxu0 0.0
    %175 = vmatpush.msra.mxu0 0.0
    %176 = vmatpush.msra.mxu0 0.0
    %177 = vmatpush.msra.mxu0 0.0
    %178 = vmatpush.msra.mxu0 0.0
    %179 = vmatpush.msra.mxu0 0.0
    %180 = vmatpush.msra.mxu0 0.0
    %181 = vmatpush.msra.mxu0 0.0
    %182 = vmatpush.msra.mxu0 %v45
    %183 = vmatpush.msra.mxu0 %v44
    %184 = vmatmul.f32.gmra.mxu0 %v166
    %v185 = vpop.f32.mrf.mxu0
    %v186 = vadd.f32 0.0, %v185
    %187 = vdwg.mxu0
    %189 = vrot.lane.b32.xlu0 %v186, 32
    %v190 = vpop.permute.xlu0 %189
    %vm192 = vcmask 523520
    %193 = vst.msk [vmem:[#allocation7] sm:$0xff] %vm192, %v190
    %v194 = vperm.slane %v46, 2
    %vm195 = vcmp.eq.s32.totalorder %v49, %v194
    %vm196 = vcmp.eq.s32.totalorder %v50, %v194
    %v197 = vperm.slane %v47, 2
    %vm198 = vcmp.eq.s32.totalorder %v49, %v197
    %vm199 = vcmp.eq.s32.totalorder %v50, %v197
    %vm200 = vmor %vm195, %vm198
    %vm201 = vmor %vm196, %vm199
    %v202 = vsel %vm200, 1, 0
    %v203 = vsel %vm201, 1, 0
    %v204 = vcvt.s32.f32 %v202
    %v205 = vcvt.s32.f32 %v203
    %206 = vxpose.xlu0.b32.start [1/16] %v204, 128
    %207 = vxpose.xlu0.b32.cont [2/16] %v205, 128
    %208 = vxpose.xlu0.b32.cont [3/16] 0.0, 128
    %209 = vxpose.xlu0.b32.cont [4/16] 0.0, 128
    %210 = vxpose.xlu0.b32.cont [5/16] 0.0, 128
    %211 = vxpose.xlu0.b32.cont [6/16] 0.0, 128
    %212 = vxpose.xlu0.b32.cont [7/16] 0.0, 128
    %213 = vxpose.xlu0.b32.cont [8/16] 0.0, 128
    %214 = vxpose.xlu0.b32.cont [9/16] 0.0, 128
    %215 = vxpose.xlu0.b32.cont [10/16] 0.0, 128
    %216 = vxpose.xlu0.b32.cont [11/16] 0.0, 128
    %217 = vxpose.xlu0.b32.cont [12/16] 0.0, 128
    %218 = vxpose.xlu0.b32.cont [13/16] 0.0, 128
    %219 = vxpose.xlu0.b32.cont [14/16] 0.0, 128
    %220 = vxpose.xlu0.b32.cont [15/16] 0.0, 128
    %221 = vxpose.xlu0.b32.end [16/16] 0.0, 128
    %v222 = vpop.trf.xlu0
    %v223 = vpop.trf.xlu0
    %v224 = vpop.trf.xlu0
    %v225 = vpop.trf.xlu0
    %v226 = vpop.trf.xlu0
    %v227 = vpop.trf.xlu0
    %v228 = vpop.trf.xlu0
    %v229 = vpop.trf.xlu0
    %v230 = vpop.trf.xlu0
    %v231 = vpop.trf.xlu0
    %v232 = vpop.trf.xlu0
    %v233 = vpop.trf.xlu0
    %v234 = vpop.trf.xlu0
    %v235 = vpop.trf.xlu0
    %v236 = vpop.trf.xlu0
    %v237 = vpop.trf.xlu0
    %v239 = vsel %vm95, %v222, 0
    %241 = vmatpush.msra.mxu0 0.0
    %242 = vmatpush.msra.mxu0 0.0
    %243 = vmatpush.msra.mxu0 0.0
    %244 = vmatpush.msra.mxu0 0.0
    %245 = vmatpush.msra.mxu0 0.0
    %246 = vmatpush.msra.mxu0 0.0
    %247 = vmatpush.msra.mxu0 0.0
    %248 = vmatpush.msra.mxu0 0.0
    %249 = vmatpush.msra.mxu0 0.0
    %250 = vmatpush.msra.mxu0 0.0
    %251 = vmatpush.msra.mxu0 0.0
    %252 = vmatpush.msra.mxu0 0.0
    %253 = vmatpush.msra.mxu0 0.0
    %254 = vmatpush.msra.mxu0 0.0
    %255 = vmatpush.msra.mxu0 %v45
    %256 = vmatpush.msra.mxu0 %v44
    %257 = vmatmul.f32.gmra.mxu0 %v239
    %v258 = vpop.f32.mrf.mxu0
    %v259 = vadd.f32 0.0, %v258
    %260 = vdwg.mxu0
    %262 = vrot.lane.b32.xlu0 %v259, 64
    %v263 = vpop.permute.xlu0 %262
    %vm265 = vcmask 785920
    %266 = vst.msk [vmem:[#allocation7] sm:$0xff] %vm265, %v263
    %v267 = vperm.slane %v46, 3
    %vm268 = vcmp.eq.s32.totalorder %v49, %v267
    %vm269 = vcmp.eq.s32.totalorder %v50, %v267
    %v270 = vperm.slane %v47, 3
    %vm271 = vcmp.eq.s32.totalorder %v49, %v270
    %vm272 = vcmp.eq.s32.totalorder %v50, %v270
    %vm273 = vmor %vm268, %vm271
    %vm274 = vmor %vm269, %vm272
    %v275 = vsel %vm273, 1, 0
    %v276 = vsel %vm274, 1, 0
    %v277 = vcvt.s32.f32 %v275
    %v278 = vcvt.s32.f32 %v276
    %279 = vxpose.xlu0.b32.start [1/16] %v277, 128
    %280 = vxpose.xlu0.b32.cont [2/16] %v278, 128
    %281 = vxpose.xlu0.b32.cont [3/16] 0.0, 128
    %282 = vxpose.xlu0.b32.cont [4/16] 0.0, 128
    %283 = vxpose.xlu0.b32.cont [5/16] 0.0, 128
    %284 = vxpose.xlu0.b32.cont [6/16] 0.0, 128
    %285 = vxpose.xlu0.b32.cont [7/16] 0.0, 128
    %286 = vxpose.xlu0.b32.cont [8/16] 0.0, 128
    %287 = vxpose.xlu0.b32.cont [9/16] 0.0, 128
    %288 = vxpose.xlu0.b32.cont [10/16] 0.0, 128
    %289 = vxpose.xlu0.b32.cont [11/16] 0.0, 128
    %290 = vxpose.xlu0.b32.cont [12/16] 0.0, 128
    %291 = vxpose.xlu0.b32.cont [13/16] 0.0, 128
    %292 = vxpose.xlu0.b32.cont [14/16] 0.0, 128
    %293 = vxpose.xlu0.b32.cont [15/16] 0.0, 128
    %294 = vxpose.xlu0.b32.end [16/16] 0.0, 128
    %v295 = vpop.trf.xlu0
    %v296 = vpop.trf.xlu0
    %v297 = vpop.trf.xlu0
    %v298 = vpop.trf.xlu0
    %v299 = vpop.trf.xlu0
    %v300 = vpop.trf.xlu0
    %v301 = vpop.trf.xlu0
    %v302 = vpop.trf.xlu0
    %v303 = vpop.trf.xlu0
    %v304 = vpop.trf.xlu0
    %v305 = vpop.trf.xlu0
    %v306 = vpop.trf.xlu0
    %v307 = vpop.trf.xlu0
    %v308 = vpop.trf.xlu0
    %v309 = vpop.trf.xlu0
    %v310 = vpop.trf.xlu0
    %v312 = vsel %vm95, %v295, 0
    %314 = vmatpush.msra.mxu0 0.0
    %315 = vmatpush.msra.mxu0 0.0
    %316 = vmatpush.msra.mxu0 0.0
    %317 = vmatpush.msra.mxu0 0.0
    %318 = vmatpush.msra.mxu0 0.0
    %319 = vmatpush.msra.mxu0 0.0
    %320 = vmatpush.msra.mxu0 0.0
    %321 = vmatpush.msra.mxu0 0.0
    %322 = vmatpush.msra.mxu0 0.0
    %323 = vmatpush.msra.mxu0 0.0
    %324 = vmatpush.msra.mxu0 0.0
    %325 = vmatpush.msra.mxu0 0.0
    %326 = vmatpush.msra.mxu0 0.0
    %327 = vmatpush.msra.mxu0 0.0
    %328 = vmatpush.msra.mxu0 %v45
    %329 = vmatpush.msra.mxu0 %v44
    %330 = vmatmul.f32.gmra.mxu0 %v312
    %v331 = vpop.f32.mrf.mxu0
    %v332 = vadd.f32 0.0, %v331
    %333 = vdwg.mxu0
    %335 = vrot.lane.b32.xlu0 %v332, 96
    %v336 = vpop.permute.xlu0 %335
    %vm338 = vcmask 1048320
    %339 = vst.msk [vmem:[#allocation7] sm:$0xff] %vm338, %v336
    // Predicated region
    $region18: #{tpu_custom_call.1} parent=1 // pred_check
      _
    $region19: #{tpu_custom_call.1} parent=1 // pred_check_branch
      %341 = sbr.rel (0) target = $region21
    $region20: #{tpu_custom_call.1} parent=1 // pred_region
      %343 = vsyncadd [#allocation4], 0
      %s345 = sshll.u32 [#allocation7], 4
      %s346 = int_to_ptr.vmem [resolvable:$true] %s345
      %s347 = sshll.u32 %s2, 4
      %s348 = int_to_ptr.hbm [resolvable:$true] %s347
      %350 = dma.vmem_to_hbm [thread:$0]  %s346, 128, %s348, [#allocation4]
    $region21: #{tpu_custom_call.1} parent=1 // pred_fallthru
      _
    // Predicated region
    $region22: #{tpu_custom_call.1} parent=1 // pred_check
      _
    $region23: #{tpu_custom_call.1} parent=1 // pred_check_branch
      %352 = sbr.rel (0) target = $region25
    $region24: #{tpu_custom_call.1} parent=1 // pred_region
      %354 = dma.done [#allocation4], 128
    $region25: #{tpu_custom_call.1} parent=1 // pred_fallthru
      _
    %355 = vsyncpa [#allocation3], 1
    %356 = vsyncpa [#allocation6], 1
    %357 = vsyncpa [#allocation4], 1

</llo_original>
